<compile_context>
chip_gen: v6e
topology: v6e:2x2x1
jax: 0.10.0
libtpu: 0.0.40
codegen_flags: <defaults>
</compile_context>

<pallas_src>
import functools

import jax
import jax.numpy as jnp
from jax import lax
from jax.experimental import pallas as pl
from jax.experimental.pallas import tpu as pltpu


def _round_up(x: int, m: int) -> int:
    return ((x + m - 1) // m) * m


def _tpu_generation() -> str:
    try:
        kind = jax.devices()[0].device_kind.lower()
    except Exception:
        return ""
    for g in ("v7", "v6", "v5"):
        if g in kind:
            return g
    return ""


def _pick_tk(in_dim: int, cap: int) -> int:
    """Single exact K step when it fits; otherwise the largest 128-multiple
    divisor of round_up(in_dim, 128) that is <= cap (no over-padded K)."""
    if in_dim <= cap:
        return in_dim
    q = _round_up(in_dim, 128) // 128
    best = 1
    for d in range(1, q + 1):
        if q % d == 0 and 128 * d <= cap:
            best = d
    return 128 * best


def _linear_kernel_single_k(x_ref, w_ref, b_ref, o_ref, *, compute_dtype):
    # Fast path: whole K in one tile -> no accumulator scratch, no zero-init,
    # bias added in the single MXU pass.
    acc = jnp.dot(x_ref[...].astype(compute_dtype),
                  w_ref[...].astype(compute_dtype),
                  preferred_element_type=jnp.float32)
    o_ref[...] = (acc + b_ref[...].astype(jnp.float32)).astype(o_ref.dtype)


def _linear_kernel_multi_k(x_ref, w_ref, b_ref, o_ref, acc_ref, *,
                           compute_dtype, in_dim, tk, needs_k_mask):
    k = pl.program_id(2)

    @pl.when(k == 0)
    def _init():
        acc_ref[...] = jnp.zeros_like(acc_ref)

    x = x_ref[...]
    w = w_ref[...]
    if needs_k_mask:
        # The last K block overhangs the true in_dim; zero both operands' OOB
        # K entries so boundary garbage cannot contaminate in-bounds outputs.
        k0 = k * tk
        x_col = k0 + lax.broadcasted_iota(jnp.int32, x.shape, 1)
        w_row = k0 + lax.broadcasted_iota(jnp.int32, w.shape, 0)
        x = jnp.where(x_col < in_dim, x, 0)
        w = jnp.where(w_row < in_dim, w, 0)

    acc_ref[...] += jnp.dot(x.astype(compute_dtype), w.astype(compute_dtype),
                            preferred_element_type=jnp.float32)

    @pl.when(k == pl.num_programs(2) - 1)
    def _finalize():
        # Bias added exactly once per (i, j) output tile, in the epilogue.
        o_ref[...] = (acc_ref[...] + b_ref[...].astype(jnp.float32)).astype(o_ref.dtype)


@functools.partial(jax.jit, static_argnames=("compute_dtype", "tm", "tn", "tk"))
def logistic_regression_forward(x, w_t, b, *, compute_dtype=None,
                                tm=None, tn=None, tk=None):
    """y = x @ w_t + b   (w_t: (in_dim, out_dim), b: (1, out_dim))."""
    batch, in_dim = x.shape
    out_dim = w_t.shape[1]
    if compute_dtype is None:
        compute_dtype = x.dtype

    gen = _tpu_generation()
    in_bytes = x.dtype.itemsize
    out_bytes = x.dtype.itemsize

    # Per-generation tile caps and VMEM budgets.
    if gen == "v6":
        # 128 MiB physical VMEM; raise the 32 MiB scoped default and go bigger.
        tm_cap, tn_cap, tk_cap = 1024, 512, 2048
        vmem_limit = 64 << 20
        budget = 56 << 20
    elif gen == "v7":
        # Only 64 MiB physical / 32 MiB scoped default: stay conservative in f32.
        tm_cap, tn_cap, tk_cap = 512, 512, 1024
        vmem_limit = None
        budget = 14 << 20
    else:
        # v5e (16 MiB scoped default) or unknown: most conservative.
        tm_cap, tn_cap, tk_cap = 512, 512, 1024
        vmem_limit = None
        budget = 14 << 20

    if tm is None:
        tm = min(tm_cap, _round_up(batch, 8))
    if tn is None:
        # Lane-dense (128-multiple) N tiles; a single j step when out_dim <= 512
        # means X is streamed from HBM exactly once.
        tn = min(tn_cap, _round_up(out_dim, 128))
    if tk is None:
        tk = _pick_tk(in_dim, tk_cap)

    single_k = tk >= in_dim
    grid_m = pl.cdiv(batch, tm)
    grid_n = pl.cdiv(out_dim, tn)
    grid_k = pl.cdiv(in_dim, tk)

    # v7x has 2 TensorCores: make sure a "parallel" grid axis has extent >= 2.
    if gen == "v7" and grid_m * grid_n == 1 and batch >= 16:
        tm = _round_up(pl.cdiv(batch, 2), 8)
        grid_m = pl.cdiv(batch, tm)

    def vmem_est(tm_, tn_, tk_):
        e = 2 * (tm_ * tk_ + tk_ * tn_ + tn_) * in_bytes + 2 * tm_ * tn_ * out_bytes
        if not single_k:
            e += tm_ * tn_ * 4  # f32 accumulator scratch
        return e

    # Safety valve: shrink the M tile if the double-buffered footprint would
    # exceed the per-generation budget.
    while vmem_est(tm, tn, tk) > budget and tm > 64:
        tm = _round_up(tm // 2, 8)
        grid_m = pl.cdiv(batch, tm)

    # Truthful HBM-traffic estimate: X re-streamed once per j step, W once per
    # i step, plus bias and one output pass.
    cost = pl.CostEstimate(
        flops=2 * batch * out_dim * in_dim,
        transcendentals=0,
        bytes_accessed=(grid_n * x.size * in_bytes
                        + grid_m * w_t.size * w_t.dtype.itemsize
                        + b.size * b.dtype.itemsize
                        + batch * out_dim * out_bytes),
    )

    compiler_kwargs = {}
    if vmem_limit is not None:
        compiler_kwargs["vmem_limit_bytes"] = vmem_limit

    if single_k:
        out = pl.pallas_call(
            functools.partial(_linear_kernel_single_k, compute_dtype=compute_dtype),
            out_shape=jax.ShapeDtypeStruct((batch, out_dim), x.dtype),
            grid_spec=pltpu.PrefetchScalarGridSpec(
                num_scalar_prefetch=0,
                grid=(grid_m, grid_n),
                in_specs=[
                    pl.BlockSpec((tm, in_dim), lambda i, j: (i, 0)),
                    pl.BlockSpec((in_dim, tn), lambda i, j: (0, j)),
                    pl.BlockSpec((1, tn), lambda i, j: (0, j)),
                ],
                out_specs=pl.BlockSpec((tm, tn), lambda i, j: (i, j)),
            ),
            compiler_params=pltpu.CompilerParams(
                dimension_semantics=("parallel", "parallel"), **compiler_kwargs),
            cost_estimate=cost,
        )(x, w_t, b)
    else:
        needs_k_mask = (in_dim % tk) != 0
        out = pl.pallas_call(
            functools.partial(_linear_kernel_multi_k, compute_dtype=compute_dtype,
                              in_dim=in_dim, tk=tk, needs_k_mask=needs_k_mask),
            out_shape=jax.ShapeDtypeStruct((batch, out_dim), x.dtype),
            grid_spec=pltpu.PrefetchScalarGridSpec(
                num_scalar_prefetch=0,
                grid=(grid_m, grid_n, grid_k),
                in_specs=[
                    pl.BlockSpec((tm, tk), lambda i, j, k: (i, k)),
                    pl.BlockSpec((tk, tn), lambda i, j, k: (k, j)),
                    pl.BlockSpec((1, tn), lambda i, j, k: (0, j)),
                ],
                out_specs=pl.BlockSpec((tm, tn), lambda i, j, k: (i, j)),
                scratch_shapes=[pltpu.VMEM((tm, tn), jnp.float32)],
            ),
            compiler_params=pltpu.CompilerParams(
                dimension_semantics=("parallel", "parallel", "arbitrary"),
                **compiler_kwargs),
            cost_estimate=cost,
        )(x, w_t, b)

    return out


def init_linear_params(key, in_dim, out_dim, dtype=jnp.float32):
    # Mirrors nn.Linear init: U(-1/sqrt(in_dim), 1/sqrt(in_dim)).
    kw, kb = jax.random.split(key)
    bound = 1.0 / (in_dim ** 0.5)
    # PyTorch stores weight as (out_dim, in_dim); we keep its transpose.
    w = jax.random.uniform(kw, (out_dim, in_dim), dtype, minval=-bound, maxval=bound)
    b = jax.random.uniform(kb, (out_dim,), dtype, minval=-bound, maxval=bound)
    return w.T, b.reshape(1, out_dim)


if __name__ == "__main__":
    key = jax.random.PRNGKey(0)
    k_x, k_p, k_x2, k_p2, k_x3, k_p3 = jax.random.split(key, 6)

    # --- Small shape matching the toy PyTorch usage (the reference module's
    #     forward is just nn.Linear -> logits, no sigmoid). Single-K fast path.
    batch, in_dim, out_dim = 8, 32, 16
    x = jax.random.normal(k_x, (batch, in_dim), jnp.float32)
    w_t, b = init_linear_params(k_p, in_dim, out_dim)

    y = logistic_regression_forward(x, w_t, b)
    jax.block_until_ready(y)
    y_ref = x @ w_t + b
    assert y.shape == (batch, out_dim)
    assert jnp.allclose(y, y_ref, atol=1e-4, rtol=1e-4)

    # --- Larger shape: multi-tile grid, exact (unpadded) K reduction,
    #     lane-dense single-j output tiles, no wrapper pad/slice passes. ---
    batch2, in_dim2, out_dim2 = 1000, 1536, 512
    x2 = jax.random.normal(k_x2, (batch2, in_dim2), jnp.float32)
    w_t2, b2 = init_linear_params(k_p2, in_dim2, out_dim2)
    y2_ref = x2 @ w_t2 + b2

    y2 = logistic_regression_forward(x2, w_t2, b2)
    jax.block_until_ready(y2)
    assert y2.shape == (batch2, out_dim2)
    assert jnp.allclose(y2, y2_ref, atol=2e-2, rtol=2e-2)

    # --- K extent that doesn't divide the K tile: exercises the in-kernel
    #     K-tail mask plus M/N boundary overhang (no padding anywhere). ---
    batch3, in_dim3, out_dim3 = 64, 400, 96
    x3 = jax.random.normal(k_x3, (batch3, in_dim3), jnp.float32)
    w_t3, b3 = init_linear_params(k_p3, in_dim3, out_dim3)
    y3_ref = x3 @ w_t3 + b3

    y3 = logistic_regression_forward(x3, w_t3, b3, tk=256)
    jax.block_until_ready(y3)
    assert y3.shape == (batch3, out_dim3)
    assert jnp.allclose(y3, y3_ref, atol=2e-2, rtol=2e-2)

    # --- bf16 compute path (MXU-native on v6e/v7x, halves streamed tile bytes
    #     in-VMEM), f32 accumulation. Callers may also store w_t in bf16. ---
    y2_bf16 = logistic_regression_forward(x2, w_t2, b2, compute_dtype=jnp.bfloat16)
    jax.block_until_ready(y2_bf16)
    assert jnp.allclose(y2_bf16, y2_ref, atol=5e-2, rtol=5e-2)

    print("KERNEL_OK")
</pallas_src>

<mosaic_0001>
module attributes {stable_mosaic.version = 11 : i64} {
  func.func @_linear_kernel_single_k(%arg0: i32, %arg1: i32, %arg2: memref<8x32xf32, #tpu.memory_space<vmem>>, %arg3: memref<32x128xf32, #tpu.memory_space<vmem>>, %arg4: memref<1x128xf32, #tpu.memory_space<vmem>>, %arg5: memref<8x128xf32, #tpu.memory_space<vmem>>) attributes {dimension_semantics = [#tpu.dimension_semantics<parallel>, #tpu.dimension_semantics<parallel>], iteration_bounds = array<i64: 1, 1>, scalar_prefetch = 0 : i64, scratch_operands = 0 : i64, tpu.core_type = #tpu.core_type<tc>, window_params = [{transform_indices = @transform_0, window_bounds = array<i64: 8, 32>}, {transform_indices = @transform_1, window_bounds = array<i64: 32, 128>}, {transform_indices = @transform_2, window_bounds = array<i64: 1, 128>}, {transform_indices = @transform_3, window_bounds = array<i64: 8, 128>}]} {
    %c0 = arith.constant 0 : index
    %c0_0 = arith.constant 0 : index
    %0 = vector.load %arg2[%c0, %c0_0] : memref<8x32xf32, #tpu.memory_space<vmem>>, vector<8x32xf32>
    %c0_1 = arith.constant 0 : index
    %c0_2 = arith.constant 0 : index
    %1 = vector.load %arg3[%c0_1, %c0_2] : memref<32x128xf32, #tpu.memory_space<vmem>>, vector<32x128xf32>
    %cst = arith.constant dense<0.000000e+00> : vector<8x128xf32>
    %2 = tpu.matmul %0, %1, %cst {dimension_numbers = #tpu.dot_dimension_numbers<[1], [0], [0], [1], [0, 0, 1, 1], [], []>} : vector<8x32xf32>, vector<32x128xf32>, vector<8x128xf32> -> vector<8x128xf32>
    %c0_3 = arith.constant 0 : index
    %c0_4 = arith.constant 0 : index
    %3 = vector.load %arg4[%c0_3, %c0_4] : memref<1x128xf32, #tpu.memory_space<vmem>>, vector<1x128xf32>
    %4 = vector.broadcast %3 : vector<1x128xf32> to vector<8x128xf32>
    %5 = arith.addf %2, %4 : vector<8x128xf32>
    %c0_5 = arith.constant 0 : index
    %c0_6 = arith.constant 0 : index
    %6 = vector.load %arg5[%c0_5, %c0_6] : memref<8x128xf32, #tpu.memory_space<vmem>>, vector<8x128xf32>
    tpu.vector_store %arg5[%c0_5, %c0_6], %5 {strides = array<i32>} : memref<8x128xf32, #tpu.memory_space<vmem>>, vector<8x128xf32>,
    return
  }
  func.func @transform_0(%arg0: i32, %arg1: i32) -> (i32, i32) {
    %c0_i32 = arith.constant 0 : i32
    %c0_i32_0 = arith.constant 0 : i32
    return %arg0, %c0_i32 : i32, i32
  }
  func.func @transform_1(%arg0: i32, %arg1: i32) -> (i32, i32) {
    %c0_i32 = arith.constant 0 : i32
    %c0_i32_0 = arith.constant 0 : i32
    return %c0_i32, %arg1 : i32, i32
  }
  func.func @transform_2(%arg0: i32, %arg1: i32) -> (i32, i32) {
    %c0_i32 = arith.constant 0 : i32
    %c0_i32_0 = arith.constant 0 : i32
    return %c0_i32, %arg1 : i32, i32
  }
  func.func @transform_3(%arg0: i32, %arg1: i32) -> (i32, i32) {
    %c0_i32 = arith.constant 0 : i32
    return %arg0, %arg1 : i32, i32
  }
}

</mosaic_0001>

<llo_original>
// kernel: logistic_regression_forward.1
$region0: #{logistic_regression_forward.1}
  #allocation0 [shape = 'u32[]', space=smem, size = 0x4, offset = 0x4, fixed_abs, tag = 'smem constant byte address 0x4 - core index']
  #allocation1 [shape = 'u32[144,128]{1,0:T(1,128)}', space=vmem, size = 0x12000, scoped, tag = 'internal scratch']
  %s0 = inlined_call_operand.vmem [shape: f32[8,32], index: 0, kind: input, shape index: {}]
  %s1 = inlined_call_operand.vmem [shape: f32[32,16], index: 1, kind: input, shape index: {}]
  %s2 = inlined_call_operand.vmem [shape: f32[1,16], index: 2, kind: input, shape index: {}]
  %s3 = inlined_call_operand.hbm [shape: f32[8,16], index: 3, kind: output, shape index: {}]
  %s4 = sld [smem:[#allocation0]]
  $region22: #{logistic_regression_forward.1} parent=0
    _
  %s6 = ssub.s32 1, %s4
  %s7 = scalar_select 0, %s6, %s4
  $region1: #{logistic_regression_forward.1} parent=0
    #allocation2 [shape = 'u8[4096]{0}', space=vmem, size = 0x1000, scoped, tag = 'output window, operand 0, single buffered']
    #allocation3 [shape = 's32[1]{0}', space=sflag, size = 0x4, scoped, tag = 'scoped memory for logistic_regression_forward.1']
    %8 = vsyncpa [#allocation3], 0
    // Predicated region
    $region2: #{logistic_regression_forward.1} parent=1 // pred_check
      _
    $region3: #{logistic_regression_forward.1} parent=1 // pred_check_branch
      %10 = sbr.rel (0) target = $region5
    $region4: #{logistic_regression_forward.1} parent=1 // pred_region
      _
    $region5: #{logistic_regression_forward.1} parent=1 // pred_fallthru
      _
    // Predicated region
    $region6: #{logistic_regression_forward.1} parent=1 // pred_check
      _
    $region7: #{logistic_regression_forward.1} parent=1 // pred_check_branch
      %12 = sbr.rel (0) target = $region9
    $region8: #{logistic_regression_forward.1} parent=1 // pred_region
      _
    $region9: #{logistic_regression_forward.1} parent=1 // pred_fallthru
      _
    // Predicated region
    $region10: #{logistic_regression_forward.1} parent=1 // pred_check
      _
    $region11: #{logistic_regression_forward.1} parent=1 // pred_check_branch
      %14 = sbr.rel (0) target = $region13
    $region12: #{logistic_regression_forward.1} parent=1 // pred_region
      _
    $region13: #{logistic_regression_forward.1} parent=1 // pred_fallthru
      _
    %v15 = vld [vmem:[%s0] sm:$0xff]
    %v16 = vld [vmem:[%s1] sm:$0xff]
    %v17 = vld [vmem:[%s1 + $0x8] sm:$0xff]
    %v18 = vld [vmem:[%s1 + $0x10] sm:$0xff]
    %v19 = vld [vmem:[%s1 + $0x18] sm:$0xff]
    %v20 = vld [vmem:[%s2] sm:$0x1]
    %v22 = vlaneseq
    %v23 = vshrl.u32 %v22, 7
    %v24 = vsub.s32 0, %v23
    %v25 = vrot.slane %v20, %v24
    %vm27 = vcmask 261120
    %v29 = vsel %vm27, %v15, 0
    %31 = vmatprep.subr.mxu0 0.0
    %32 = vmatpush1.msra.mxu0 0.0
    %33 = vmatprep.subr.mxu0 0.0
    %34 = vmatpush1.msra.mxu0 0.0
    %35 = vmatprep.subr.mxu0 0.0
    %36 = vmatpush1.msra.mxu0 0.0
    %37 = vmatprep.subr.mxu0 0.0
    %38 = vmatpush1.msra.mxu0 0.0
    %39 = vmatprep.subr.mxu0 0.0
    %40 = vmatpush1.msra.mxu0 0.0
    %41 = vmatprep.subr.mxu0 0.0
    %42 = vmatpush1.msra.mxu0 0.0
    %43 = vmatprep.subr.mxu0 0.0
    %44 = vmatpush1.msra.mxu0 0.0
    %45 = vmatprep.subr.mxu0 0.0
    %46 = vmatpush1.msra.mxu0 0.0
    %47 = vmatprep.subr.mxu0 0.0
    %48 = vmatpush1.msra.mxu0 0.0
    %49 = vmatprep.subr.mxu0 0.0
    %50 = vmatpush1.msra.mxu0 0.0
    %51 = vmatprep.subr.mxu0 0.0
    %52 = vmatpush1.msra.mxu0 0.0
    %53 = vmatprep.subr.mxu0 0.0
    %54 = vmatpush1.msra.mxu0 0.0
    %55 = vmatprep.subr.mxu0 0.0
    %56 = vmatpush1.msra.mxu0 %v19
    %57 = vmatprep.subr.mxu0 0.0
    %58 = vmatpush1.msra.mxu0 %v18
    %59 = vmatprep.subr.mxu0 0.0
    %60 = vmatpush1.msra.mxu0 %v17
    %61 = vmatprep.subr.mxu0 0.0
    %62 = vmatpush1.msra.mxu0 %v16
    %63 = vmatprep.subr.mxu0 0.0
    %64 = vmatpush2.msra.mxu0 0.0
    %65 = vmatprep.subr.mxu0 0.0
    %66 = vmatpush2.msra.mxu0 0.0
    %67 = vmatprep.subr.mxu0 0.0
    %68 = vmatpush2.msra.mxu0 0.0
    %69 = vmatprep.subr.mxu0 0.0
    %70 = vmatpush2.msra.mxu0 0.0
    %71 = vmatprep.subr.mxu0 0.0
    %72 = vmatpush2.msra.mxu0 0.0
    %73 = vmatprep.subr.mxu0 0.0
    %74 = vmatpush2.msra.mxu0 0.0
    %75 = vmatprep.subr.mxu0 0.0
    %76 = vmatpush2.msra.mxu0 0.0
    %77 = vmatprep.subr.mxu0 0.0
    %78 = vmatpush2.msra.mxu0 0.0
    %79 = vmatprep.subr.mxu0 0.0
    %80 = vmatpush2.msra.mxu0 0.0
    %81 = vmatprep.subr.mxu0 0.0
    %82 = vmatpush2.msra.mxu0 0.0
    %83 = vmatprep.subr.mxu0 0.0
    %84 = vmatpush2.msra.mxu0 0.0
    %85 = vmatprep.subr.mxu0 0.0
    %86 = vmatpush2.msra.mxu0 0.0
    %87 = vmatprep.subr.mxu0 0.0
    %88 = vmatpush2.msra.mxu0 0.0
    %89 = vmatprep.subr.mxu0 0.0
    %90 = vmatpush2.msra.mxu0 0.0
    %91 = vmatprep.subr.mxu0 0.0
    %92 = vmatpush2.msra.mxu0 0.0
    %93 = vmatprep.subr.mxu0 0.0
    %94 = vmatpush2.msra.mxu0 0.0
    %95 = vmatprep.mubr.f32.mxu0 0.0
    %96 = vmatmul.mubr.f32.gmra.mxu0 %v29
    %v97 = vpop.f32.mrf.mxu0
    %v98 = vadd.f32 %v25, %v97
    %v99 = vpop.f32.mrf.mxu0
    %100 = vdwg.mxu0
    %101 = vst [vmem:[#allocation2] sm:$0xff] %v98
    // Predicated region
    $region14: #{logistic_regression_forward.1} parent=1 // pred_check
      _
    $region15: #{logistic_regression_forward.1} parent=1 // pred_check_branch
      %103 = sbr.rel (0) target = $region17
    $region16: #{logistic_regression_forward.1} parent=1 // pred_region
      %s105 = ssub.s32 128, 128
      %106 = vsyncadd [#allocation3], %s105
      %s108 = sshll.u32 [#allocation2], 4
      %s109 = int_to_ptr.vmem [resolvable:$true] %s108
      %111 = dma.vmem_to_hbm [thread:$0]  %s109, 128, %s3, [#allocation3]
    $region17: #{logistic_regression_forward.1} parent=1 // pred_fallthru
      _
    // Predicated region
    $region18: #{logistic_regression_forward.1} parent=1 // pred_check
      _
    $region19: #{logistic_regression_forward.1} parent=1 // pred_check_branch
      %113 = sbr.rel (0) target = $region21
    $region20: #{logistic_regression_forward.1} parent=1 // pred_region
      %114 = dma.done [#allocation3], 128
    $region21: #{logistic_regression_forward.1} parent=1 // pred_fallthru
      _
    %115 = vsyncpa [#allocation3], 1

</llo_original>
